<compile_context>
chip_gen: v5e
topology: v5e:2x2
jax: 0.10.0
libtpu: 0.0.40
codegen_flags: <defaults>
</compile_context>

<pallas_src>
import functools

import jax
import jax.numpy as jnp
from jax import lax
from jax.experimental import pallas as pl
from jax.experimental.pallas import tpu as pltpu


# ~4 MiB of f32 working set per input stream per block (sized against the f32
# upcast, not the input itemsize, so bf16 inputs do not over-inflate blocks).
_CE_TARGET_F32_BYTES = 4 * 1024 * 1024
_L1_LANES = 512
_L1_TILE_ROWS = 2048            # 2048 x 512 f32 = 4 MiB per stream per block
# Scoped VMEM: ~2 streams x 2 buffers x 4 MiB + f32 temporaries ~= 30 MiB,
# comfortably below v7x's 64 MiB physical (v5e/v6e have 128 MiB physical).
_VMEM_LIMIT_BYTES = 48 * 1024 * 1024


# ---------------------------------------------------------------------------
# Soft-target cross-entropy: one partial sum per (batch-tile, hw-tile).
# Blocks are (bn, C, tile_hw): classes on sublanes, spatial locations on lanes.
# ---------------------------------------------------------------------------
def _make_ce_kernel(n, hw, bn, tile_hw, nb, nj):
    ragged_b = (n % bn) != 0
    ragged_hw = (hw % tile_hw) != 0

    def kernel(pred_ref, gt_ref, out_ref):
        b = pl.program_id(0)
        j = pl.program_id(1)

        pred = pred_ref[...].astype(jnp.float32)   # (bn, C, T)
        gt = gt_ref[...].astype(jnp.float32)       # (bn, C, T)

        # Stable lse-only soft-target CE per spatial column:
        #   ce = sum_c(gt) * (m + lse) - sum_c(gt * pred)
        m = jnp.max(pred, axis=1, keepdims=True)                           # (bn,1,T)
        lse = jnp.log(jnp.sum(jnp.exp(pred - m), axis=1, keepdims=True))   # (bn,1,T)
        g = jnp.sum(gt, axis=1, keepdims=True)                             # (bn,1,T)
        s = jnp.sum(gt * pred, axis=1, keepdims=True)                      # (bn,1,T)
        ce = g * (m + lse) - s                                             # (bn,1,T)

        def emit(vals):
            col = jnp.sum(vals, axis=0)                                # (1, T)
            out_ref[...] = jnp.sum(col, axis=1, keepdims=True)         # (1, 1)

        if not (ragged_b or ragged_hw):
            emit(ce)
        else:
            conds = []
            if ragged_b:
                conds.append(b == nb - 1)
            if ragged_hw:
                conds.append(j == nj - 1)
            is_tail = functools.reduce(jnp.logical_or, conds)

            @pl.when(jnp.logical_not(is_tail))
            def _():
                emit(ce)

            @pl.when(is_tail)
            def _():
                # Mask out-of-range rows/columns of the partial boundary block.
                # The class reduction mixes values only within a column, so any
                # garbage stays confined to masked positions (mask-before-sum).
                masks = []
                if ragged_b:
                    row = b * bn + lax.broadcasted_iota(jnp.int32, (bn, 1, 1), 0)
                    masks.append(row < n)
                if ragged_hw:
                    col = j * tile_hw + lax.broadcasted_iota(
                        jnp.int32, (1, 1, tile_hw), 2)
                    masks.append(col < hw)
                mask = functools.reduce(jnp.logical_and, masks)
                emit(jnp.where(mask, ce, 0.0))

    return kernel


def _ce_total(pred3, gt3):
    n, c, hw = pred3.shape
    # Size blocks against the f32 working set (inputs are upcast in-kernel).
    cap_hw = max(128, (_CE_TARGET_F32_BYTES // (c * 4)) // 128 * 128)
    if hw <= cap_hw:
        tile_hw = hw                        # full H*W per block (no hw mask)
        nj = 1
        # Small per-sample footprint: block several batch samples per step.
        bn = max(1, min(n, _CE_TARGET_F32_BYTES // max(1, c * hw * 4)))
        nb = pl.cdiv(n, bn)
    else:
        tile_hw = cap_hw                    # multiple of 128
        nj = pl.cdiv(hw, tile_hw)
        bn = 1
        nb = n

    itemsize = jnp.dtype(pred3.dtype).itemsize
    cost = pl.CostEstimate(
        flops=int(8 * n * c * hw),
        transcendentals=int(n * c * hw + n * hw),
        bytes_accessed=int(2 * n * c * hw * itemsize + 4 * nb * nj),
    )

    partials = pl.pallas_call(
        _make_ce_kernel(n, hw, bn, tile_hw, nb, nj),
        out_shape=jax.ShapeDtypeStruct((nb, nj, 1, 1), jnp.float32),
        grid=(nb, nj),
        in_specs=[
            pl.BlockSpec((bn, c, tile_hw), lambda b, j: (b, 0, j)),
            pl.BlockSpec((bn, c, tile_hw), lambda b, j: (b, 0, j)),
        ],
        out_specs=pl.BlockSpec((None, None, 1, 1), lambda b, j: (b, j, 0, 0)),
        compiler_params=pltpu.CompilerParams(
            dimension_semantics=("parallel", "parallel"),
            vmem_limit_bytes=_VMEM_LIMIT_BYTES),
        cost_estimate=cost,
    )(pred3, gt3)
    return jnp.sum(partials)


# ---------------------------------------------------------------------------
# L1 (sum of |Xs - Ys|): one partial sum per row-tile of a lane-dense view.
# ---------------------------------------------------------------------------
def _make_l1_kernel(rows, tile_rows):
    ragged = (rows % tile_rows) != 0

    def kernel(xs_ref, ys_ref, out_ref):
        d = jnp.abs(xs_ref[...].astype(jnp.float32)
                    - ys_ref[...].astype(jnp.float32))        # (R, K)

        def emit(vals):
            col = jnp.sum(vals, axis=0, keepdims=True)        # (1, K)
            out_ref[...] = jnp.sum(col, axis=1, keepdims=True)  # (1, 1)

        if not ragged:
            emit(d)
        else:
            i = pl.program_id(0)
            last = pl.num_programs(0) - 1

            @pl.when(i != last)
            def _():
                emit(d)

            @pl.when(i == last)
            def _():
                row = i * tile_rows + lax.broadcasted_iota(
                    jnp.int32, (tile_rows, 1), 0)
                emit(jnp.where(row < rows, d, 0.0))

    return kernel


def _l1_total(xs, ys):
    total = xs.size
    xs_f = xs.reshape(-1)
    ys_f = ys.reshape(-1)

    # Widest lane count in {512, 256, 128} that divides the element count so
    # the 2-D view is a pure bitcast (no pad / no copy); otherwise process the
    # 512-aligned prefix in the kernel and the <512-element tail in XLA.
    k = next((cand for cand in (_L1_LANES, 256, 128) if total % cand == 0),
             _L1_LANES)
    rows = total // k
    main = rows * k
    rem = total - main

    parts = []
    if rows > 0:
        target_rows = _L1_TILE_ROWS * (_L1_LANES // k)   # keep ~4 MiB f32/block
        tile_rows = rows if rows <= target_rows else target_rows
        num_tiles = pl.cdiv(rows, tile_rows)

        if rem:
            xs2 = xs_f[:main].reshape(rows, k)
            ys2 = ys_f[:main].reshape(rows, k)
        else:
            xs2 = xs_f.reshape(rows, k)
            ys2 = ys_f.reshape(rows, k)

        itemsize = jnp.dtype(xs.dtype).itemsize
        cost = pl.CostEstimate(
            flops=int(3 * main),
            transcendentals=0,
            bytes_accessed=int(2 * main * itemsize + 4 * num_tiles),
        )

        partials = pl.pallas_call(
            _make_l1_kernel(rows, tile_rows),
            out_shape=jax.ShapeDtypeStruct((num_tiles, 1, 1), jnp.float32),
            grid=(num_tiles,),
            in_specs=[
                pl.BlockSpec((tile_rows, k), lambda i: (i, 0)),
                pl.BlockSpec((tile_rows, k), lambda i: (i, 0)),
            ],
            out_specs=pl.BlockSpec((None, 1, 1), lambda i: (i, 0, 0)),
            compiler_params=pltpu.CompilerParams(
                dimension_semantics=("parallel",),
                vmem_limit_bytes=_VMEM_LIMIT_BYTES),
            cost_estimate=cost,
        )(xs2, ys2)
        parts.append(jnp.sum(partials))

    if rem:
        # <k-element ragged tail: a single tiny XLA reduction.
        parts.append(jnp.sum(jnp.abs(xs_f[main:].astype(jnp.float32)
                                     - ys_f[main:].astype(jnp.float32))))

    out = parts[0]
    for p in parts[1:]:
        out = out + p
    return out


# ---------------------------------------------------------------------------
# Public wrapper matching L1CrossEntropyRegLoss.forward(pred, gt, Xs, Ys).
# ---------------------------------------------------------------------------
def l1_cross_entropy_reg_loss(pred, gt, xs, ys, *, lambda_cross_entropy=0.5):
    """pred, gt: NCHW (gt = soft class probabilities, i.e. gt.float()).
    xs, ys: regression tensors of identical shape (any shape)."""
    n, c, h, w = pred.shape
    hw = h * w
    # NCHW is already contiguous as (N, C, H*W): no transpose, pure bitcast.
    pred3 = pred.reshape(n, c, hw)
    gt3 = gt.reshape(n, c, hw)

    ce_sum = _ce_total(pred3, gt3)
    l1_sum = _l1_total(xs, ys)

    ce_mean = ce_sum / jnp.float32(n * hw)
    l1_mean = l1_sum / jnp.float32(xs.size)
    return l1_mean + jnp.float32(lambda_cross_entropy) * ce_mean


def _reference(pred, gt, xs, ys, lam=0.5):
    # Pure-JAX reference mirroring torch L1Loss + CrossEntropyLoss(prob targets).
    logp = jax.nn.log_softmax(pred.astype(jnp.float32), axis=1)
    ce = jnp.mean(-jnp.sum(gt.astype(jnp.float32) * logp, axis=1))
    l1 = jnp.mean(jnp.abs(xs.astype(jnp.float32) - ys.astype(jnp.float32)))
    return l1 + lam * ce


if __name__ == "__main__":
    key = jax.random.PRNGKey(0)
    k1, k2, k3, k4 = jax.random.split(key, 4)

    N, C, H, W = 2, 4, 16, 16
    pred = jax.random.normal(k1, (N, C, H, W), dtype=jnp.float32)
    # Soft class-probability ground truth (what gt.float() implies in PyTorch's
    # probability-target CrossEntropyLoss mode).
    gt = jax.nn.softmax(jax.random.normal(k2, (N, C, H, W), dtype=jnp.float32),
                        axis=1)
    xs = jax.random.normal(k3, (N, C, H, W), dtype=jnp.float32)
    ys = jax.random.normal(k4, (N, C, H, W), dtype=jnp.float32)

    loss_fn = jax.jit(functools.partial(l1_cross_entropy_reg_loss,
                                        lambda_cross_entropy=0.5))
    loss = jax.block_until_ready(loss_fn(pred, gt, xs, ys))
    ref = _reference(pred, gt, xs, ys)
    assert jnp.allclose(loss, ref, rtol=1e-5, atol=1e-5), (loss, ref)

    print("KERNEL_OK")
</pallas_src>

<mosaic_0001>
module attributes {stable_mosaic.version = 11 : i64} {
  func.func @kernel(%arg0: i32, %arg1: i32, %arg2: memref<2x4x256xf32, #tpu.memory_space<vmem>>, %arg3: memref<2x4x256xf32, #tpu.memory_space<vmem>>, %arg4: memref<1x1x1x1xf32, #tpu.memory_space<vmem>>) attributes {dimension_semantics = [#tpu.dimension_semantics<parallel>, #tpu.dimension_semantics<parallel>], iteration_bounds = array<i64: 1, 1>, scalar_prefetch = 0 : i64, scratch_operands = 0 : i64, tpu.core_type = #tpu.core_type<tc>, window_params = [{transform_indices = @transform_0, window_bounds = array<i64: 2, 4, 256>}, {transform_indices = @transform_1, window_bounds = array<i64: 2, 4, 256>}, {transform_indices = @transform_2, window_bounds = array<i64: 1, 1, 1, 1>}]} {
    %c0 = arith.constant 0 : index
    %c0_0 = arith.constant 0 : index
    %c0_1 = arith.constant 0 : index
    %0 = vector.load %arg2[%c0, %c0_0, %c0_1] : memref<2x4x256xf32, #tpu.memory_space<vmem>>, vector<2x4x256xf32>
    %c0_2 = arith.constant 0 : index
    %c0_3 = arith.constant 0 : index
    %c0_4 = arith.constant 0 : index
    %1 = vector.load %arg3[%c0_2, %c0_3, %c0_4] : memref<2x4x256xf32, #tpu.memory_space<vmem>>, vector<2x4x256xf32>
    %cst = arith.constant dense<0xFF800000> : vector<2x256xf32>
    %2 = vector.multi_reduction <maximumf>, %0, %cst [1] : vector<2x4x256xf32> to vector<2x256xf32>
    %3 = vector.shape_cast %2 : vector<2x256xf32> to vector<2x1x256xf32>
    %4 = vector.broadcast %3 : vector<2x1x256xf32> to vector<2x4x256xf32>
    %5 = arith.subf %0, %4 : vector<2x4x256xf32>
    %6 = math.exp %5 : vector<2x4x256xf32>
    %cst_5 = arith.constant dense<0.000000e+00> : vector<2x256xf32>
    %7 = vector.multi_reduction <add>, %6, %cst_5 [1] : vector<2x4x256xf32> to vector<2x256xf32>
    %8 = vector.shape_cast %7 : vector<2x256xf32> to vector<2x1x256xf32>
    %9 = math.log %8 : vector<2x1x256xf32>
    %cst_6 = arith.constant dense<0.000000e+00> : vector<2x256xf32>
    %10 = vector.multi_reduction <add>, %1, %cst_6 [1] : vector<2x4x256xf32> to vector<2x256xf32>
    %11 = vector.shape_cast %10 : vector<2x256xf32> to vector<2x1x256xf32>
    %12 = arith.mulf %1, %0 : vector<2x4x256xf32>
    %cst_7 = arith.constant dense<0.000000e+00> : vector<2x256xf32>
    %13 = vector.multi_reduction <add>, %12, %cst_7 [1] : vector<2x4x256xf32> to vector<2x256xf32>
    %14 = vector.shape_cast %13 : vector<2x256xf32> to vector<2x1x256xf32>
    %15 = arith.addf %3, %9 : vector<2x1x256xf32>
    %16 = arith.mulf %11, %15 : vector<2x1x256xf32>
    %17 = arith.subf %16, %14 : vector<2x1x256xf32>
    %cst_8 = arith.constant dense<0.000000e+00> : vector<1x256xf32>
    %18 = vector.multi_reduction <add>, %17, %cst_8 [0] : vector<2x1x256xf32> to vector<1x256xf32>
    %cst_9 = arith.constant dense<0.000000e+00> : vector<1xf32>
    %19 = vector.multi_reduction <add>, %18, %cst_9 [1] : vector<1x256xf32> to vector<1xf32>
    %20 = vector.shape_cast %19 : vector<1xf32> to vector<1x1xf32>
    %c0_10 = arith.constant 0 : index
    %c0_11 = arith.constant 0 : index
    %c0_12 = arith.constant 0 : index
    %c0_13 = arith.constant 0 : index
    %21 = vector.load %arg4[%c0_10, %c0_11, %c0_12, %c0_13] : memref<1x1x1x1xf32, #tpu.memory_space<vmem>>, vector<1x1x1x1xf32>
    %22 = vector.shape_cast %21 : vector<1x1x1x1xf32> to vector<1x1xf32>
    %23 = vector.shape_cast %20 : vector<1x1xf32> to vector<1x1x1x1xf32>
    tpu.vector_store %arg4[%c0_10, %c0_11, %c0_12, %c0_13], %23 {strides = array<i32>} : memref<1x1x1x1xf32, #tpu.memory_space<vmem>>, vector<1x1x1x1xf32>,
    return
  }
  func.func @transform_0(%arg0: i32, %arg1: i32) -> (i32, i32, i32) {
    %c0_i32 = arith.constant 0 : i32
    %c0_i32_0 = arith.constant 0 : i32
    return %arg0, %c0_i32, %arg1 : i32, i32, i32
  }
  func.func @transform_1(%arg0: i32, %arg1: i32) -> (i32, i32, i32) {
    %c0_i32 = arith.constant 0 : i32
    %c0_i32_0 = arith.constant 0 : i32
    return %arg0, %c0_i32, %arg1 : i32, i32, i32
  }
  func.func @transform_2(%arg0: i32, %arg1: i32) -> (i32, i32, i32, i32) {
    %c0_i32 = arith.constant 0 : i32
    %c0_i32_0 = arith.constant 0 : i32
    %c0_i32_1 = arith.constant 0 : i32
    return %arg0, %arg1, %c0_i32, %c0_i32_0 : i32, i32, i32, i32
  }
}

module attributes {stable_mosaic.version = 11 : i64} {
  func.func @kernel(%arg0: i32, %arg1: memref<4x512xf32, #tpu.memory_space<vmem>>, %arg2: memref<4x512xf32, #tpu.memory_space<vmem>>, %arg3: memref<1x1x1xf32, #tpu.memory_space<vmem>>) attributes {dimension_semantics = [#tpu.dimension_semantics<parallel>], iteration_bounds = array<i64: 1>, scalar_prefetch = 0 : i64, scratch_operands = 0 : i64, tpu.core_type = #tpu.core_type<tc>, window_params = [{transform_indices = @transform_0, window_bounds = array<i64: 4, 512>}, {transform_indices = @transform_1, window_bounds = array<i64: 4, 512>}, {transform_indices = @transform_2, window_bounds = array<i64: 1, 1, 1>}]} {
    %c0 = arith.constant 0 : index
    %c0_0 = arith.constant 0 : index
    %0 = vector.load %arg1[%c0, %c0_0] : memref<4x512xf32, #tpu.memory_space<vmem>>, vector<4x512xf32>
    %c0_1 = arith.constant 0 : index
    %c0_2 = arith.constant 0 : index
    %1 = vector.load %arg2[%c0_1, %c0_2] : memref<4x512xf32, #tpu.memory_space<vmem>>, vector<4x512xf32>
    %2 = arith.subf %0, %1 : vector<4x512xf32>
    %3 = math.absf %2 : vector<4x512xf32>
    %cst = arith.constant dense<0.000000e+00> : vector<512xf32>
    %4 = vector.multi_reduction <add>, %3, %cst [0] : vector<4x512xf32> to vector<512xf32>
    %5 = vector.shape_cast %4 : vector<512xf32> to vector<1x512xf32>
    %cst_3 = arith.constant dense<0.000000e+00> : vector<1xf32>
    %6 = vector.multi_reduction <add>, %5, %cst_3 [1] : vector<1x512xf32> to vector<1xf32>
    %7 = vector.shape_cast %6 : vector<1xf32> to vector<1x1xf32>
    %c0_4 = arith.constant 0 : index
    %c0_5 = arith.constant 0 : index
    %c0_6 = arith.constant 0 : index
    %8 = vector.load %arg3[%c0_4, %c0_5, %c0_6] : memref<1x1x1xf32, #tpu.memory_space<vmem>>, vector<1x1x1xf32>
    %9 = vector.shape_cast %8 : vector<1x1x1xf32> to vector<1x1xf32>
    %10 = vector.shape_cast %7 : vector<1x1xf32> to vector<1x1x1xf32>
    tpu.vector_store %arg3[%c0_4, %c0_5, %c0_6], %10 {strides = array<i32>} : memref<1x1x1xf32, #tpu.memory_space<vmem>>, vector<1x1x1xf32>,
    return
  }
  func.func @transform_0(%arg0: i32) -> (i32, i32) {
    %c0_i32 = arith.constant 0 : i32
    %c0_i32_0 = arith.constant 0 : i32
    return %arg0, %c0_i32 : i32, i32
  }
  func.func @transform_1(%arg0: i32) -> (i32, i32) {
    %c0_i32 = arith.constant 0 : i32
    %c0_i32_0 = arith.constant 0 : i32
    return %arg0, %c0_i32 : i32, i32
  }
  func.func @transform_2(%arg0: i32) -> (i32, i32, i32) {
    %c0_i32 = arith.constant 0 : i32
    %c0_i32_0 = arith.constant 0 : i32
    %c0_i32_1 = arith.constant 0 : i32
    return %arg0, %c0_i32, %c0_i32_0 : i32, i32, i32
  }
}

</mosaic_0001>

<llo_original>
// kernel: l1_cross_entropy_reg_loss.2
$region0: #{l1_cross_entropy_reg_loss.2}
  #allocation0 [shape = 'u32[]', space=smem, size = 0x4, offset = 0x4, fixed_abs, tag = 'smem constant byte address 0x4 - core index']
  #allocation1 [shape = 'u32[72,128]{1,0:T(1,128)}', space=vmem, size = 0x9000, scoped, tag = 'internal scratch']
  %s0 = inlined_call_operand.vmem [shape: f32[2,4,256], index: 0, kind: input, shape index: {}]
  %s1 = inlined_call_operand.vmem [shape: f32[2,4,256], index: 1, kind: input, shape index: {}]
  %s2 = inlined_call_operand.hbm [shape: f32[1,1,1,1], index: 2, kind: output, shape index: {}]
  %s3 = sld [smem:[#allocation0]]
  $region18: #{l1_cross_entropy_reg_loss.2} parent=0
    _
  %s5 = ssub.s32 1, %s3
  %s6 = scalar_select 0, %s5, %s3
  $region1: #{l1_cross_entropy_reg_loss.2} parent=0
    #allocation2 [shape = 'u8[512]{0}', space=vmem, size = 0x400, scoped, tag = 'output window, operand 0, single buffered']
    #allocation3 [shape = 's32[1]{0}', space=sflag, size = 0x4, scoped, tag = 'scoped memory for l1_cross_entropy_reg_loss.2']
    %7 = vsyncpa [#allocation3], 0
    // Predicated region
    $region2: #{l1_cross_entropy_reg_loss.2} parent=1 // pred_check
      _
    $region3: #{l1_cross_entropy_reg_loss.2} parent=1 // pred_check_branch
      %9 = sbr.rel (0) target = $region5
    $region4: #{l1_cross_entropy_reg_loss.2} parent=1 // pred_region
      _
    $region5: #{l1_cross_entropy_reg_loss.2} parent=1 // pred_fallthru
      _
    // Predicated region
    $region6: #{l1_cross_entropy_reg_loss.2} parent=1 // pred_check
      _
    $region7: #{l1_cross_entropy_reg_loss.2} parent=1 // pred_check_branch
      %11 = sbr.rel (0) target = $region9
    $region8: #{l1_cross_entropy_reg_loss.2} parent=1 // pred_region
      _
    $region9: #{l1_cross_entropy_reg_loss.2} parent=1 // pred_fallthru
      _
    %v12 = vld [vmem:[%s0] sm:$0xff]
    %v13 = vld [vmem:[%s0 + $0x8] sm:$0xff]
    %v14 = vld [vmem:[%s1] sm:$0xff]
    %v15 = vld [vmem:[%s1 + $0x8] sm:$0xff]
    %18 = vst [vmem:[#allocation1] ss:$2 sm:$0xff] %v12
    %v19 = vld.sshfl [vmem:[#allocation1] sm:$0xff pattern:$0x75316420]
    %v20 = vld.sshfl [vmem:[#allocation1 + $0x8] sm:$0xff pattern:$0x75316420]
    %s21 = scalar_lea.vmem [#allocation1], 16
    %22 = vst [vmem:[%s21] ss:$2 sm:$0xff] %v13
    %v23 = vld.sshfl [vmem:[#allocation1 + $0x10] sm:$0xff pattern:$0x75316420]
    %v24 = vld.sshfl [vmem:[#allocation1 + $0x18] sm:$0xff pattern:$0x75316420]
    %vm29 = vcmask 1043456
    %v30 = vsel %vm29, %v19, -inf
    %v31 = vrot.slane %v30, 4
    %v32 = vmax.f32 %v30, %v31
    %v33 = vrot.slane %v32, 2
    %v34 = vmax.f32 %v32, %v33
    %v35 = vrot.slane %v34, 1
    %v36 = vmax.f32 %v34, %v35
    %v37 = vsel %vm29, %v20, -inf
    %v38 = vrot.slane %v37, 4
    %v39 = vmax.f32 %v37, %v38
    %v40 = vrot.slane %v39, 2
    %v41 = vmax.f32 %v39, %v40
    %v42 = vrot.slane %v41, 1
    %v43 = vmax.f32 %v41, %v42
    %v44 = vsel %vm29, %v23, -inf
    %v45 = vrot.slane %v44, 4
    %v46 = vmax.f32 %v44, %v45
    %v47 = vrot.slane %v46, 2
    %v48 = vmax.f32 %v46, %v47
    %v49 = vrot.slane %v48, 1
    %v50 = vmax.f32 %v48, %v49
    %v51 = vsel %vm29, %v24, -inf
    %v52 = vrot.slane %v51, 4
    %v53 = vmax.f32 %v51, %v52
    %v54 = vrot.slane %v53, 2
    %v55 = vmax.f32 %v53, %v54
    %v56 = vrot.slane %v55, 1
    %v57 = vmax.f32 %v55, %v56
    %v62 = vrot.slane %v43, 4
    %v63 = vrot.slane %v57, 4
    %v64 = vsel %vm29, %v36, %v62
    %v65 = vsel %vm29, %v50, %v63
    %v68 = vsub.f32 %v12, %v64
    %v69 = vsub.f32 %v13, %v65
    %v70 = vmul.f32 %v68, 1.442695
    %v71 = vpow.pop %v70
    %v72 = vmul.f32 %v69, 1.442695
    %v73 = vpow.pop %v72
    %76 = vst [vmem:[#allocation1] ss:$2 sm:$0xff] %v71
    %v77 = vld.sshfl [vmem:[#allocation1] sm:$0xff pattern:$0x75316420]
    %v78 = vld.sshfl [vmem:[#allocation1 + $0x8] sm:$0xff pattern:$0x75316420]
    %s79 = scalar_lea.vmem [#allocation1], 16
    %80 = vst [vmem:[%s79] ss:$2 sm:$0xff] %v73
    %v81 = vld.sshfl [vmem:[#allocation1 + $0x10] sm:$0xff pattern:$0x75316420]
    %v82 = vld.sshfl [vmem:[#allocation1 + $0x18] sm:$0xff pattern:$0x75316420]
    %v87 = vsel %vm29, %v77, 0.0
    %v88 = vrot.slane %v87, 4
    %v89 = vadd.f32 %v87, %v88
    %v90 = vrot.slane %v89, 2
    %v91 = vadd.f32 %v89, %v90
    %v92 = vrot.slane %v91, 1
    %v93 = vadd.f32 %v91, %v92
    %v94 = vsel %vm29, %v78, 0.0
    %v95 = vrot.slane %v94, 4
    %v96 = vadd.f32 %v94, %v95
    %v97 = vrot.slane %v96, 2
    %v98 = vadd.f32 %v96, %v97
    %v99 = vrot.slane %v98, 1
    %v100 = vadd.f32 %v98, %v99
    %v101 = vsel %vm29, %v81, 0.0
    %v102 = vrot.slane %v101, 4
    %v103 = vadd.f32 %v101, %v102
    %v104 = vrot.slane %v103, 2
    %v105 = vadd.f32 %v103, %v104
    %v106 = vrot.slane %v105, 1
    %v107 = vadd.f32 %v105, %v106
    %v108 = vsel %vm29, %v82, 0.0
    %v109 = vrot.slane %v108, 4
    %v110 = vadd.f32 %v108, %v109
    %v111 = vrot.slane %v110, 2
    %v112 = vadd.f32 %v110, %v111
    %v113 = vrot.slane %v112, 1
    %v114 = vadd.f32 %v112, %v113
    %v115 = vlog2.pop %v93
    %v116 = vmul.f32 %v115, 0.6931472
    %v117 = vlog2.pop %v100
    %v118 = vmul.f32 %v117, 0.6931472
    %v119 = vlog2.pop %v107
    %v120 = vmul.f32 %v119, 0.6931472
    %v121 = vlog2.pop %v114
    %v122 = vmul.f32 %v121, 0.6931472
    %125 = vst [vmem:[#allocation1] ss:$2 sm:$0xff] %v14
    %v126 = vld.sshfl [vmem:[#allocation1] sm:$0xff pattern:$0x75316420]
    %v127 = vld.sshfl [vmem:[#allocation1 + $0x8] sm:$0xff pattern:$0x75316420]
    %s128 = scalar_lea.vmem [#allocation1], 16
    %129 = vst [vmem:[%s128] ss:$2 sm:$0xff] %v15
    %v130 = vld.sshfl [vmem:[#allocation1 + $0x10] sm:$0xff pattern:$0x75316420]
    %v131 = vld.sshfl [vmem:[#allocation1 + $0x18] sm:$0xff pattern:$0x75316420]
    %v136 = vsel %vm29, %v126, 0.0
    %v137 = vrot.slane %v136, 4
    %v138 = vadd.f32 %v136, %v137
    %v139 = vrot.slane %v138, 2
    %v140 = vadd.f32 %v138, %v139
    %v141 = vrot.slane %v140, 1
    %v142 = vadd.f32 %v140, %v141
    %v143 = vsel %vm29, %v127, 0.0
    %v144 = vrot.slane %v143, 4
    %v145 = vadd.f32 %v143, %v144
    %v146 = vrot.slane %v145, 2
    %v147 = vadd.f32 %v145, %v146
    %v148 = vrot.slane %v147, 1
    %v149 = vadd.f32 %v147, %v148
    %v150 = vsel %vm29, %v130, 0.0
    %v151 = vrot.slane %v150, 4
    %v152 = vadd.f32 %v150, %v151
    %v153 = vrot.slane %v152, 2
    %v154 = vadd.f32 %v152, %v153
    %v155 = vrot.slane %v154, 1
    %v156 = vadd.f32 %v154, %v155
    %v157 = vsel %vm29, %v131, 0.0
    %v158 = vrot.slane %v157, 4
    %v159 = vadd.f32 %v157, %v158
    %v160 = vrot.slane %v159, 2
    %v161 = vadd.f32 %v159, %v160
    %v162 = vrot.slane %v161, 1
    %v163 = vadd.f32 %v161, %v162
    %v164 = vmul.f32 %v14, %v12
    %v165 = vmul.f32 %v15, %v13
    %168 = vst [vmem:[#allocation1] ss:$2 sm:$0xff] %v164
    %v169 = vld.sshfl [vmem:[#allocation1] sm:$0xff pattern:$0x75316420]
    %v170 = vld.sshfl [vmem:[#allocation1 + $0x8] sm:$0xff pattern:$0x75316420]
    %s171 = scalar_lea.vmem [#allocation1], 16
    %172 = vst [vmem:[%s171] ss:$2 sm:$0xff] %v165
    %v173 = vld.sshfl [vmem:[#allocation1 + $0x10] sm:$0xff pattern:$0x75316420]
    %v174 = vld.sshfl [vmem:[#allocation1 + $0x18] sm:$0xff pattern:$0x75316420]
    %v179 = vsel %vm29, %v169, 0.0
    %v180 = vrot.slane %v179, 4
    %v181 = vadd.f32 %v179, %v180
    %v182 = vrot.slane %v181, 2
    %v183 = vadd.f32 %v181, %v182
    %v184 = vrot.slane %v183, 1
    %v185 = vadd.f32 %v183, %v184
    %v186 = vsel %vm29, %v170, 0.0
    %v187 = vrot.slane %v186, 4
    %v188 = vadd.f32 %v186, %v187
    %v189 = vrot.slane %v188, 2
    %v190 = vadd.f32 %v188, %v189
    %v191 = vrot.slane %v190, 1
    %v192 = vadd.f32 %v190, %v191
    %v193 = vsel %vm29, %v173, 0.0
    %v194 = vrot.slane %v193, 4
    %v195 = vadd.f32 %v193, %v194
    %v196 = vrot.slane %v195, 2
    %v197 = vadd.f32 %v195, %v196
    %v198 = vrot.slane %v197, 1
    %v199 = vadd.f32 %v197, %v198
    %v200 = vsel %vm29, %v174, 0.0
    %v201 = vrot.slane %v200, 4
    %v202 = vadd.f32 %v200, %v201
    %v203 = vrot.slane %v202, 2
    %v204 = vadd.f32 %v202, %v203
    %v205 = vrot.slane %v204, 1
    %v206 = vadd.f32 %v204, %v205
    %v207 = vadd.f32 %v36, %v116
    %v208 = vadd.f32 %v43, %v118
    %v209 = vadd.f32 %v50, %v120
    %v210 = vadd.f32 %v57, %v122
    %v211 = vmul.f32 %v142, %v207
    %v212 = vmul.f32 %v149, %v208
    %v213 = vmul.f32 %v156, %v209
    %v214 = vmul.f32 %v163, %v210
    %v215 = vsub.f32 %v211, %v185
    %v216 = vsub.f32 %v212, %v192
    %v217 = vsub.f32 %v213, %v199
    %v218 = vsub.f32 %v214, %v206
    %v219 = vadd.f32 %v215, %v217
    %v220 = vadd.f32 %v216, %v218
    %v221 = vadd.f32 %v219, %v220
    %222 = vadd.xlane.f32.xlu0 %v221
    %v223 = vpop.xlane.xlu0 %222
    %vm224 = vcmask 0
    %225 = vst.msk [vmem:[#allocation2] sm:$0x1] %vm224, %v223
    // Predicated region
    $region10: #{l1_cross_entropy_reg_loss.2} parent=1 // pred_check
      _
    $region11: #{l1_cross_entropy_reg_loss.2} parent=1 // pred_check_branch
      %227 = sbr.rel (0) target = $region13
    $region12: #{l1_cross_entropy_reg_loss.2} parent=1 // pred_region
      %229 = vsyncadd [#allocation3], 0
      %s231 = sshll.u32 [#allocation2], 4
      %s232 = int_to_ptr.vmem [resolvable:$true] %s231
      %s233 = sshll.u32 %s2, 4
      %s234 = int_to_ptr.hbm [resolvable:$true] %s233
      %236 = dma.vmem_to_hbm [thread:$0]  %s232, 16, %s234, [#allocation3]
    $region13: #{l1_cross_entropy_reg_loss.2} parent=1 // pred_fallthru
      _
    // Predicated region
    $region14: #{l1_cross_entropy_reg_loss.2} parent=1 // pred_check
      _
    $region15: #{l1_cross_entropy_reg_loss.2} parent=1 // pred_check_branch
      %238 = sbr.rel (0) target = $region17
    $region16: #{l1_cross_entropy_reg_loss.2} parent=1 // pred_region
      %240 = dma.done [#allocation3], 16
    $region17: #{l1_cross_entropy_reg_loss.2} parent=1 // pred_fallthru
      _
    %241 = vsyncpa [#allocation3], 1

// kernel: l1_cross_entropy_reg_loss.3
$region0: #{l1_cross_entropy_reg_loss.3}
  #allocation0 [shape = 'u32[]', space=smem, size = 0x4, offset = 0x4, fixed_abs, tag = 'smem constant byte address 0x4 - core index']
  #allocation1 [shape = 'u32[72,128]{1,0:T(1,128)}', space=vmem, size = 0x9000, scoped, tag = 'internal scratch']
  %s0 = inlined_call_operand.vmem [shape: f32[4,512], index: 0, kind: input, shape index: {}]
  %s1 = inlined_call_operand.vmem [shape: f32[4,512], index: 1, kind: input, shape index: {}]
  %s2 = inlined_call_operand.hbm [shape: f32[1,1,1], index: 2, kind: output, shape index: {}]
  %s3 = sld [smem:[#allocation0]]
  $region18: #{l1_cross_entropy_reg_loss.3} parent=0
    _
  %s5 = ssub.s32 1, %s3
  %s6 = scalar_select 0, %s5, %s3
  $region1: #{l1_cross_entropy_reg_loss.3} parent=0
    #allocation2 [shape = 'u8[512]{0}', space=vmem, size = 0x400, scoped, tag = 'output window, operand 0, single buffered']
    #allocation3 [shape = 's32[1]{0}', space=sflag, size = 0x4, scoped, tag = 'scoped memory for l1_cross_entropy_reg_loss.3']
    %7 = vsyncpa [#allocation3], 0
    // Predicated region
    $region2: #{l1_cross_entropy_reg_loss.3} parent=1 // pred_check
      _
    $region3: #{l1_cross_entropy_reg_loss.3} parent=1 // pred_check_branch
      %9 = sbr.rel (0) target = $region5
    $region4: #{l1_cross_entropy_reg_loss.3} parent=1 // pred_region
      _
    $region5: #{l1_cross_entropy_reg_loss.3} parent=1 // pred_fallthru
      _
    // Predicated region
    $region6: #{l1_cross_entropy_reg_loss.3} parent=1 // pred_check
      _
    $region7: #{l1_cross_entropy_reg_loss.3} parent=1 // pred_check_branch
      %11 = sbr.rel (0) target = $region9
    $region8: #{l1_cross_entropy_reg_loss.3} parent=1 // pred_region
      _
    $region9: #{l1_cross_entropy_reg_loss.3} parent=1 // pred_fallthru
      _
    %v12 = vld [vmem:[%s0] sm:$0xff]
    %v13 = vld [vmem:[%s0 + $0x8] sm:$0xff]
    %v14 = vld [vmem:[%s1] sm:$0xff]
    %v15 = vld [vmem:[%s1 + $0x8] sm:$0xff]
    %v16 = vsub.f32 %v12, %v14
    %v17 = vsub.f32 %v13, %v15
    %v18 = vand.u32 2147483647, %v16
    %v19 = vand.u32 2147483647, %v17
    %22 = vst [vmem:[#allocation1] ss:$2 sm:$0xff] %v18
    %s23 = scalar_lea.vmem [#allocation1], 16
    %24 = vst [vmem:[%s23] ss:$2 sm:$0xff] %v19
    %v25 = vld.sshfl [vmem:[#allocation1] sm:$0xff pattern:$0x75316420]
    %v26 = vld.sshfl [vmem:[#allocation1 + $0x8] sm:$0xff pattern:$0x75316420]
    %v27 = vld.sshfl [vmem:[#allocation1 + $0x10] sm:$0xff pattern:$0x75316420]
    %v28 = vld.sshfl [vmem:[#allocation1 + $0x18] sm:$0xff pattern:$0x75316420]
    %vm33 = vcmask 1043456
    %v34 = vsel %vm33, %v25, 0.0
    %v35 = vrot.slane %v34, 4
    %v36 = vadd.f32 %v34, %v35
    %v37 = vrot.slane %v36, 2
    %v38 = vadd.f32 %v36, %v37
    %v39 = vrot.slane %v38, 1
    %v40 = vadd.f32 %v38, %v39
    %v41 = vsel %vm33, %v26, 0.0
    %v42 = vrot.slane %v41, 4
    %v43 = vadd.f32 %v41, %v42
    %v44 = vrot.slane %v43, 2
    %v45 = vadd.f32 %v43, %v44
    %v46 = vrot.slane %v45, 1
    %v47 = vadd.f32 %v45, %v46
    %v48 = vsel %vm33, %v27, 0.0
    %v49 = vrot.slane %v48, 4
    %v50 = vadd.f32 %v48, %v49
    %v51 = vrot.slane %v50, 2
    %v52 = vadd.f32 %v50, %v51
    %v53 = vrot.slane %v52, 1
    %v54 = vadd.f32 %v52, %v53
    %v55 = vsel %vm33, %v28, 0.0
    %v56 = vrot.slane %v55, 4
    %v57 = vadd.f32 %v55, %v56
    %v58 = vrot.slane %v57, 2
    %v59 = vadd.f32 %v57, %v58
    %v60 = vrot.slane %v59, 1
    %v61 = vadd.f32 %v59, %v60
    %v62 = vadd.f32 %v40, %v47
    %v63 = vadd.f32 %v62, %v54
    %v64 = vadd.f32 %v63, %v61
    %65 = vadd.xlane.f32.xlu0 %v64
    %v66 = vpop.xlane.xlu0 %65
    %vm67 = vcmask 0
    %68 = vst.msk [vmem:[#allocation2] sm:$0x1] %vm67, %v66
    // Predicated region
    $region10: #{l1_cross_entropy_reg_loss.3} parent=1 // pred_check
      _
    $region11: #{l1_cross_entropy_reg_loss.3} parent=1 // pred_check_branch
      %70 = sbr.rel (0) target = $region13
    $region12: #{l1_cross_entropy_reg_loss.3} parent=1 // pred_region
      %72 = vsyncadd [#allocation3], 0
      %s74 = sshll.u32 [#allocation2], 4
      %s75 = int_to_ptr.vmem [resolvable:$true] %s74
      %s76 = sshll.u32 %s2, 4
      %s77 = int_to_ptr.hbm [resolvable:$true] %s76
      %79 = dma.vmem_to_hbm [thread:$0]  %s75, 16, %s77, [#allocation3]
    $region13: #{l1_cross_entropy_reg_loss.3} parent=1 // pred_fallthru
      _
    // Predicated region
    $region14: #{l1_cross_entropy_reg_loss.3} parent=1 // pred_check
      _
    $region15: #{l1_cross_entropy_reg_loss.3} parent=1 // pred_check_branch
      %81 = sbr.rel (0) target = $region17
    $region16: #{l1_cross_entropy_reg_loss.3} parent=1 // pred_region
      %83 = dma.done [#allocation3], 16
    $region17: #{l1_cross_entropy_reg_loss.3} parent=1 // pred_fallthru
      _
    %84 = vsyncpa [#allocation3], 1

</llo_original>
